<compile_context>
chip_gen: v7x
topology: tpu7x:2x2x1
jax: 0.10.0
libtpu: 0.0.40
codegen_flags: <defaults>
</compile_context>

<pallas_src>
import jax
import jax.numpy as jnp
from jax.experimental import pallas as pl
from jax.experimental.pallas import tpu as pltpu

LANE = 128       # lane width: pad feature dims to this
SUBLANE = 8      # sublane width: pad / tile batch to this


def _round_up(n, m):
    return ((n + m - 1) // m) * m


def _linear_wrapper_kernel(xh_ref, w_xh_ref, b_rnn_ref, w_lin_ref, b_lin_ref,
                           y_ref, hnew_ref):
    # One fused MXU contraction for the RNN cell: [x | h] @ [W_ih ; W_hh].
    pre = jnp.dot(xh_ref[...], w_xh_ref[...],
                  preferred_element_type=jnp.float32) + b_rnn_ref[...]
    h_new = jnp.tanh(pre)                      # EUP tanh, f32
    hnew_ref[...] = h_new.astype(hnew_ref.dtype)
    # Linear head: one more MXU pass.
    y = jnp.dot(h_new, w_lin_ref[...],
                preferred_element_type=jnp.float32) + b_lin_ref[...]
    y_ref[...] = y.astype(y_ref.dtype)


def init_params(key, input_size, hidden_size, output_size):
    """Mirrors PyTorch's uniform(-1/sqrt(H), 1/sqrt(H)) init.

    Weights are stored pre-transposed as [in, out] (logical, un-padded)."""
    ks = jax.random.split(key, 6)
    bound = 1.0 / jnp.sqrt(hidden_size)
    u = lambda k, shape: jax.random.uniform(k, shape, jnp.float32, -bound, bound)
    return {
        "w_ih": u(ks[0], (input_size, hidden_size)),
        "w_hh": u(ks[1], (hidden_size, hidden_size)),
        "b_ih": u(ks[2], (1, hidden_size)),
        "b_hh": u(ks[3], (1, hidden_size)),
        "w_lin": u(ks[4], (hidden_size, output_size)),
        "b_lin": u(ks[5], (1, output_size)),
    }


def pack_params(params, input_size, hidden_size, output_size):
    """One-time packing for the kernel: pad to lane multiples, stack the two RNN
    weights into a single [I+H, H] matrix, and pre-sum the two RNN biases."""
    Ip = _round_up(input_size, LANE)
    Hp = _round_up(hidden_size, LANE)
    Op = _round_up(output_size, LANE)

    w_ih = jnp.zeros((Ip, Hp), jnp.float32).at[:input_size, :hidden_size].set(params["w_ih"])
    w_hh = jnp.zeros((Hp, Hp), jnp.float32).at[:hidden_size, :hidden_size].set(params["w_hh"])
    w_xh = jnp.concatenate([w_ih, w_hh], axis=0)                    # [Ip+Hp, Hp]
    b_rnn = jnp.zeros((1, Hp), jnp.float32).at[:, :hidden_size].set(
        params["b_ih"] + params["b_hh"])                            # pre-summed bias
    w_lin = jnp.zeros((Hp, Op), jnp.float32).at[:hidden_size, :output_size].set(params["w_lin"])
    b_lin = jnp.zeros((1, Op), jnp.float32).at[:, :output_size].set(params["b_lin"])

    return {
        "w_xh": w_xh, "b_rnn": b_rnn, "w_lin": w_lin, "b_lin": b_lin,
        "dims": (input_size, hidden_size, output_size, Ip, Hp, Op),
    }


def linear_wrapper_forward(x, hidden, packed, *, batch_tile=SUBLANE):
    """Fused RNN-cell + linear-head forward.

    x:      [B, input_size]  float32
    hidden: [B, hidden_size] float32
    Returns (y [B, output_size], hidden_new [B, hidden_size]).
    """
    I, H, O, Ip, Hp, Op = packed["dims"]
    B = x.shape[0]
    Bp = _round_up(B, batch_tile)
    n_b = Bp // batch_tile
    K = Ip + Hp

    # Pad and fuse [x | h] into one lane-dense operand (zero padding is exact).
    xp = jnp.zeros((Bp, Ip), jnp.float32).at[:B, :I].set(x)
    hp = jnp.zeros((Bp, Hp), jnp.float32).at[:B, :H].set(hidden)
    xh = jnp.concatenate([xp, hp], axis=1)                          # [Bp, Ip+Hp]

    # Tiny footprint: weights + activations are well under 1 MiB even
    # double-buffered; set the scoped VMEM limit explicitly anyway.
    # TODO(synk): at real hidden sizes, tile K/N of w_xh / w_lin with an f32
    # VMEM accumulator instead of full-array specs (v7x has only 64 MiB VMEM).
    grid_spec = pltpu.PrefetchScalarGridSpec(
        num_scalar_prefetch=0,
        grid=(n_b,),
        in_specs=[
            pl.BlockSpec((batch_tile, K), lambda b: (b, 0)),        # [x|h] batch tile
            pl.BlockSpec((K, Hp), lambda b: (0, 0)),                # stacked RNN weight
            pl.BlockSpec((1, Hp), lambda b: (0, 0)),                # pre-summed RNN bias
            pl.BlockSpec((Hp, Op), lambda b: (0, 0)),               # linear weight
            pl.BlockSpec((1, Op), lambda b: (0, 0)),                # linear bias
        ],
        out_specs=(
            pl.BlockSpec((batch_tile, Op), lambda b: (b, 0)),       # y   (lane-dense)
            pl.BlockSpec((batch_tile, Hp), lambda b: (b, 0)),       # h'  (lane-dense)
        ),
    )

    y_pad, h_pad = pl.pallas_call(
        _linear_wrapper_kernel,
        out_shape=(
            jax.ShapeDtypeStruct((Bp, Op), jnp.float32),
            jax.ShapeDtypeStruct((Bp, Hp), jnp.float32),
        ),
        grid_spec=grid_spec,
        compiler_params=pltpu.CompilerParams(
            dimension_semantics=("parallel",),          # shards batch across TCs on v7x
            vmem_limit_bytes=32 * 1024 * 1024,
        ),
    )(xh, packed["w_xh"], packed["b_rnn"], packed["w_lin"], packed["b_lin"])

    return y_pad[:B, :O], h_pad[:B, :H]


def reference_forward(x, hidden, params):
    h_new = jnp.tanh(x @ params["w_ih"] + params["b_ih"]
                     + hidden @ params["w_hh"] + params["b_hh"])
    y = h_new @ params["w_lin"] + params["b_lin"]
    return y, h_new


if __name__ == "__main__":
    B, input_size, hidden_size, output_size = 8, 16, 32, 8

    key = jax.random.PRNGKey(0)
    k_x, k_h, k_p = jax.random.split(key, 3)
    x = jax.random.normal(k_x, (B, input_size), jnp.float32)
    hidden = jax.random.normal(k_h, (B, hidden_size), jnp.float32)

    params = init_params(k_p, input_size, hidden_size, output_size)
    packed = pack_params(params, input_size, hidden_size, output_size)

    y, h_new = linear_wrapper_forward(x, hidden, packed)
    jax.block_until_ready((y, h_new))

    y_ref, h_ref = reference_forward(x, hidden, params)
    assert y.shape == y_ref.shape and h_new.shape == h_ref.shape
    assert jnp.allclose(y, y_ref, atol=1e-5, rtol=1e-5)
    assert jnp.allclose(h_new, h_ref, atol=1e-5, rtol=1e-5)

    print("KERNEL_OK")
</pallas_src>

<mosaic_0001>
module attributes {stable_mosaic.version = 11 : i64} {
  func.func @_linear_wrapper_kernel(%arg0: i32, %arg1: memref<8x256xf32, #tpu.memory_space<vmem>>, %arg2: memref<256x128xf32, #tpu.memory_space<vmem>>, %arg3: memref<1x128xf32, #tpu.memory_space<vmem>>, %arg4: memref<128x128xf32, #tpu.memory_space<vmem>>, %arg5: memref<1x128xf32, #tpu.memory_space<vmem>>, %arg6: memref<8x128xf32, #tpu.memory_space<vmem>>, %arg7: memref<8x128xf32, #tpu.memory_space<vmem>>) attributes {dimension_semantics = [#tpu.dimension_semantics<parallel>], iteration_bounds = array<i64: 1>, scalar_prefetch = 0 : i64, scratch_operands = 0 : i64, tpu.core_type = #tpu.core_type<tc>, window_params = [{transform_indices = @transform_0, window_bounds = array<i64: 8, 256>}, {pipeline_mode = #tpu.pipeline_mode<synchronous>, transform_indices = @transform_1, window_bounds = array<i64: 256, 128>}, {pipeline_mode = #tpu.pipeline_mode<synchronous>, transform_indices = @transform_2, window_bounds = array<i64: 1, 128>}, {pipeline_mode = #tpu.pipeline_mode<synchronous>, transform_indices = @transform_3, window_bounds = array<i64: 128, 128>}, {pipeline_mode = #tpu.pipeline_mode<synchronous>, transform_indices = @transform_4, window_bounds = array<i64: 1, 128>}, {transform_indices = @transform_5, window_bounds = array<i64: 8, 128>}, {transform_indices = @transform_6, window_bounds = array<i64: 8, 128>}]} {
    %c0 = arith.constant 0 : index
    %c0_0 = arith.constant 0 : index
    %0 = vector.load %arg1[%c0, %c0_0] : memref<8x256xf32, #tpu.memory_space<vmem>>, vector<8x256xf32>
    %c0_1 = arith.constant 0 : index
    %c0_2 = arith.constant 0 : index
    %1 = vector.load %arg2[%c0_1, %c0_2] : memref<256x128xf32, #tpu.memory_space<vmem>>, vector<256x128xf32>
    %cst = arith.constant dense<0.000000e+00> : vector<8x128xf32>
    %2 = tpu.matmul %0, %1, %cst {dimension_numbers = #tpu.dot_dimension_numbers<[1], [0], [0], [1], [0, 0, 1, 1], [], []>} : vector<8x256xf32>, vector<256x128xf32>, vector<8x128xf32> -> vector<8x128xf32>
    %c0_3 = arith.constant 0 : index
    %c0_4 = arith.constant 0 : index
    %3 = vector.load %arg3[%c0_3, %c0_4] : memref<1x128xf32, #tpu.memory_space<vmem>>, vector<1x128xf32>
    %4 = vector.broadcast %3 : vector<1x128xf32> to vector<8x128xf32>
    %5 = arith.addf %2, %4 : vector<8x128xf32>
    %6 = math.tanh %5 : vector<8x128xf32>
    %c0_5 = arith.constant 0 : index
    %c0_6 = arith.constant 0 : index
    %7 = vector.load %arg7[%c0_5, %c0_6] : memref<8x128xf32, #tpu.memory_space<vmem>>, vector<8x128xf32>
    tpu.vector_store %arg7[%c0_5, %c0_6], %6 {strides = array<i32>} : memref<8x128xf32, #tpu.memory_space<vmem>>, vector<8x128xf32>,
    %c0_7 = arith.constant 0 : index
    %c0_8 = arith.constant 0 : index
    %8 = vector.load %arg4[%c0_7, %c0_8] : memref<128x128xf32, #tpu.memory_space<vmem>>, vector<128x128xf32>
    %cst_9 = arith.constant dense<0.000000e+00> : vector<8x128xf32>
    %9 = tpu.matmul %6, %8, %cst_9 {dimension_numbers = #tpu.dot_dimension_numbers<[1], [0], [0], [1], [0, 0, 1, 1], [], []>} : vector<8x128xf32>, vector<128x128xf32>, vector<8x128xf32> -> vector<8x128xf32>
    %c0_10 = arith.constant 0 : index
    %c0_11 = arith.constant 0 : index
    %10 = vector.load %arg5[%c0_10, %c0_11] : memref<1x128xf32, #tpu.memory_space<vmem>>, vector<1x128xf32>
    %11 = vector.broadcast %10 : vector<1x128xf32> to vector<8x128xf32>
    %12 = arith.addf %9, %11 : vector<8x128xf32>
    %c0_12 = arith.constant 0 : index
    %c0_13 = arith.constant 0 : index
    %13 = vector.load %arg6[%c0_12, %c0_13] : memref<8x128xf32, #tpu.memory_space<vmem>>, vector<8x128xf32>
    tpu.vector_store %arg6[%c0_12, %c0_13], %12 {strides = array<i32>} : memref<8x128xf32, #tpu.memory_space<vmem>>, vector<8x128xf32>,
    return
  }
  func.func @transform_0(%arg0: i32) -> (i32, i32) {
    %c0_i32 = arith.constant 0 : i32
    %c0_i32_0 = arith.constant 0 : i32
    return %arg0, %c0_i32 : i32, i32
  }
  func.func @transform_1(%arg0: i32) -> (i32, i32) {
    %c0_i32 = arith.constant 0 : i32
    %c0_i32_0 = arith.constant 0 : i32
    %c0_i32_1 = arith.constant 0 : i32
    return %c0_i32, %c0_i32_0 : i32, i32
  }
  func.func @transform_2(%arg0: i32) -> (i32, i32) {
    %c0_i32 = arith.constant 0 : i32
    %c0_i32_0 = arith.constant 0 : i32
    %c0_i32_1 = arith.constant 0 : i32
    return %c0_i32, %c0_i32_0 : i32, i32
  }
  func.func @transform_3(%arg0: i32) -> (i32, i32) {
    %c0_i32 = arith.constant 0 : i32
    %c0_i32_0 = arith.constant 0 : i32
    %c0_i32_1 = arith.constant 0 : i32
    return %c0_i32, %c0_i32_0 : i32, i32
  }
  func.func @transform_4(%arg0: i32) -> (i32, i32) {
    %c0_i32 = arith.constant 0 : i32
    %c0_i32_0 = arith.constant 0 : i32
    %c0_i32_1 = arith.constant 0 : i32
    return %c0_i32, %c0_i32_0 : i32, i32
  }
  func.func @transform_5(%arg0: i32) -> (i32, i32) {
    %c0_i32 = arith.constant 0 : i32
    %c0_i32_0 = arith.constant 0 : i32
    return %arg0, %c0_i32 : i32, i32
  }
  func.func @transform_6(%arg0: i32) -> (i32, i32) {
    %c0_i32 = arith.constant 0 : i32
    %c0_i32_0 = arith.constant 0 : i32
    return %arg0, %c0_i32 : i32, i32
  }
}

</mosaic_0001>

<llo_original>
// kernel: tpu_custom_call.1
$region0: #{tpu_custom_call.1}
  #allocation0 [shape = 'u32[]', space=smem, size = 0x4, offset = 0x4, fixed_abs, tag = 'smem constant byte address 0x4 - core index']
  #allocation1 [shape = 'u32[144,128]{1,0:T(1,128)}', space=vmem, size = 0x12000, scoped, tag = 'internal scratch']
  %s0 = inlined_call_operand.hbm [shape: f32[8,256], index: 0, kind: input, shape index: {}]
  %s1 = inlined_call_operand.hbm [shape: f32[256,128], index: 1, kind: input, shape index: {}]
  %s2 = inlined_call_operand.vmem [shape: f32[1,128], index: 2, kind: input, shape index: {}]
  %s3 = inlined_call_operand.hbm [shape: f32[128,128], index: 3, kind: input, shape index: {}]
  %s4 = inlined_call_operand.vmem [shape: f32[1,128], index: 4, kind: input, shape index: {}]
  %s5 = inlined_call_operand.hbm [shape: f32[8,128], index: 5, kind: output, shape index: {0}]
  %s6 = inlined_call_operand.hbm [shape: f32[8,128], index: 6, kind: output, shape index: {1}]
  %7 = xla_tuple %s5, %s6
  %s8 = sld [smem:[#allocation0]]
  $region50: #{tpu_custom_call.1} parent=0
    _
  %s10 = ssub.s32 1, %s8
  %s11 = scalar_select 0, %s10, %s8
  $region1: #{tpu_custom_call.1} parent=0
    #allocation2 [shape = 'u8[8192]{0}', space=vmem, size = 0x2000, scoped, tag = 'input window, operand 0, single buffered']
    #allocation3 [shape = 's32[1]{0}', space=sflag, size = 0x4, scoped, tag = 'scoped memory for tpu_custom_call.1']
    #allocation4 [shape = 's32[1]{0}', space=sflag, size = 0x4, scoped, tag = 'scoped memory for tpu_custom_call.1']
    #allocation5 [shape = 'u8[131072]{0}', space=vmem, size = 0x20000, scoped, tag = 'input window, operand 1, single buffered']
    #allocation6 [shape = 's32[1]{0}', space=sflag, size = 0x4, scoped, tag = 'scoped memory for tpu_custom_call.1']
    #allocation7 [shape = 'u8[65536]{0}', space=vmem, size = 0x10000, scoped, tag = 'input window, operand 3, single buffered']
    #allocation8 [shape = 'u8[4096]{0}', space=vmem, size = 0x1000, scoped, tag = 'output window, operand 0, single buffered']
    #allocation9 [shape = 'u8[4096]{0}', space=vmem, size = 0x1000, scoped, tag = 'output window, operand 1, single buffered']
    #allocation10 [shape = 's32[1]{0}', space=sflag, size = 0x4, scoped, tag = 'scoped memory for tpu_custom_call.1']
    %12 = vsyncpa [#allocation3], 0
    %13 = vsyncpa [#allocation6], 0
    %14 = vsyncpa [#allocation4], 0
    %15 = vsyncpa [#allocation10], 0
    // Predicated region
    $region2: #{tpu_custom_call.1} parent=1 // pred_check
      _
    $region3: #{tpu_custom_call.1} parent=1 // pred_check_branch
      %17 = sbr.rel (0) target = $region5
    $region4: #{tpu_custom_call.1} parent=1 // pred_region
      %s19 = ssub.s32 256, 256
      %20 = vsyncadd [#allocation3], %s19
      %s22 = sshll.u32 [#allocation2], 4
      %s23 = int_to_ptr.vmem [resolvable:$true] %s22
      %25 = dma.hbm_to_vmem [thread:$0]  %s0, 256, %s23, [#allocation3]
    $region5: #{tpu_custom_call.1} parent=1 // pred_fallthru
      _
    // Predicated region
    $region6: #{tpu_custom_call.1} parent=1 // pred_check
      _
    $region7: #{tpu_custom_call.1} parent=1 // pred_check_branch
      %27 = sbr.rel (0) target = $region9
    $region8: #{tpu_custom_call.1} parent=1 // pred_region
      %s29 = ssub.s32 4096, 4096
      %30 = vsyncadd [#allocation6], %s29
      %s31 = sshll.u32 [#allocation5], 4
      %s32 = int_to_ptr.vmem [resolvable:$true] %s31
      %37 = dma.hbm_to_vmem [thread:$0]  %s1, 4096, %s32, [#allocation6], 128, 128, 8
    $region9: #{tpu_custom_call.1} parent=1 // pred_fallthru
      _
    // Predicated region
    $region10: #{tpu_custom_call.1} parent=1 // pred_check
      _
    $region11: #{tpu_custom_call.1} parent=1 // pred_check_branch
      %39 = sbr.rel (0) target = $region13
    $region12: #{tpu_custom_call.1} parent=1 // pred_region
      _
    $region13: #{tpu_custom_call.1} parent=1 // pred_fallthru
      _
    // Predicated region
    $region14: #{tpu_custom_call.1} parent=1 // pred_check
      _
    $region15: #{tpu_custom_call.1} parent=1 // pred_check_branch
      %41 = sbr.rel (0) target = $region17
    $region16: #{tpu_custom_call.1} parent=1 // pred_region
      %s43 = ssub.s32 2048, 2048
      %44 = vsyncadd [#allocation6], %s43
      %s45 = sshll.u32 [#allocation7], 4
      %s46 = int_to_ptr.vmem [resolvable:$true] %s45
      %51 = dma.hbm_to_vmem [thread:$0]  %s3, 2048, %s46, [#allocation6], 128, 128, 8
    $region17: #{tpu_custom_call.1} parent=1 // pred_fallthru
      _
    // Predicated region
    $region18: #{tpu_custom_call.1} parent=1 // pred_check
      _
    $region19: #{tpu_custom_call.1} parent=1 // pred_check_branch
      %53 = sbr.rel (0) target = $region21
    $region20: #{tpu_custom_call.1} parent=1 // pred_region
      _
    $region21: #{tpu_custom_call.1} parent=1 // pred_fallthru
      _
    // Predicated region
    $region22: #{tpu_custom_call.1} parent=1 // pred_check
      _
    $region23: #{tpu_custom_call.1} parent=1 // pred_check_branch
      %55 = sbr.rel (0) target = $region25
    $region24: #{tpu_custom_call.1} parent=1 // pred_region
      %56 = dma.done [#allocation3], 256
    $region25: #{tpu_custom_call.1} parent=1 // pred_fallthru
      _
    // Predicated region
    $region26: #{tpu_custom_call.1} parent=1 // pred_check
      _
    $region27: #{tpu_custom_call.1} parent=1 // pred_check_branch
      %58 = sbr.rel (0) target = $region29
    $region28: #{tpu_custom_call.1} parent=1 // pred_region
      %59 = dma.done [#allocation6], 4096
    $region29: #{tpu_custom_call.1} parent=1 // pred_fallthru
      _
    // Predicated region
    $region30: #{tpu_custom_call.1} parent=1 // pred_check
      _
    $region31: #{tpu_custom_call.1} parent=1 // pred_check_branch
      %61 = sbr.rel (0) target = $region33
    $region32: #{tpu_custom_call.1} parent=1 // pred_region
      %62 = dma.done [#allocation6], 2048
    $region33: #{tpu_custom_call.1} parent=1 // pred_fallthru
      _
    %v63 = vld [vmem:[#allocation2] sm:$0xff]
    %v64 = vld [vmem:[#allocation2 + $0x8] sm:$0xff]
    %v65 = vld [vmem:[#allocation5] sm:$0xff]
    %v66 = vld [vmem:[#allocation5 + $0x8] sm:$0xff]
    %v67 = vld [vmem:[#allocation5 + $0x10] sm:$0xff]
    %v68 = vld [vmem:[#allocation5 + $0x18] sm:$0xff]
    %v69 = vld [vmem:[#allocation5 + $0x20] sm:$0xff]
    %v70 = vld [vmem:[#allocation5 + $0x28] sm:$0xff]
    %v71 = vld [vmem:[#allocation5 + $0x30] sm:$0xff]
    %v72 = vld [vmem:[#allocation5 + $0x38] sm:$0xff]
    %v73 = vld [vmem:[#allocation5 + $0x40] sm:$0xff]
    %v74 = vld [vmem:[#allocation5 + $0x48] sm:$0xff]
    %v75 = vld [vmem:[#allocation5 + $0x50] sm:$0xff]
    %v76 = vld [vmem:[#allocation5 + $0x58] sm:$0xff]
    %v77 = vld [vmem:[#allocation5 + $0x60] sm:$0xff]
    %v78 = vld [vmem:[#allocation5 + $0x68] sm:$0xff]
    %v79 = vld [vmem:[#allocation5 + $0x70] sm:$0xff]
    %v80 = vld [vmem:[#allocation5 + $0x78] sm:$0xff]
    %v81 = vld [vmem:[#allocation5 + $0x80] sm:$0xff]
    %v82 = vld [vmem:[#allocation5 + $0x88] sm:$0xff]
    %v83 = vld [vmem:[#allocation5 + $0x90] sm:$0xff]
    %v84 = vld [vmem:[#allocation5 + $0x98] sm:$0xff]
    %v85 = vld [vmem:[#allocation5 + $0xa0] sm:$0xff]
    %v86 = vld [vmem:[#allocation5 + $0xa8] sm:$0xff]
    %v87 = vld [vmem:[#allocation5 + $0xb0] sm:$0xff]
    %v88 = vld [vmem:[#allocation5 + $0xb8] sm:$0xff]
    %v89 = vld [vmem:[#allocation5 + $0xc0] sm:$0xff]
    %v90 = vld [vmem:[#allocation5 + $0xc8] sm:$0xff]
    %v91 = vld [vmem:[#allocation5 + $0xd0] sm:$0xff]
    %v92 = vld [vmem:[#allocation5 + $0xd8] sm:$0xff]
    %v93 = vld [vmem:[#allocation5 + $0xe0] sm:$0xff]
    %v94 = vld [vmem:[#allocation5 + $0xe8] sm:$0xff]
    %v95 = vld [vmem:[#allocation5 + $0xf0] sm:$0xff]
    %v96 = vld [vmem:[#allocation5 + $0xf8] sm:$0xff]
    %v97 = vld [vmem:[%s2] sm:$0x1]
    %v99 = vlaneseq
    %v100 = vshrl.u32 %v99, 7
    %v101 = vsub.s32 0, %v100
    %v102 = vrot.slane %v97, %v101
    %104 = vmatprep.subr.mxu0 0.0
    %105 = vmatpush1.msra.mxu0 %v65
    %106 = vmatprep.subr.mxu0 0.0
    %107 = vmatpush1.msra.mxu0 %v66
    %108 = vmatprep.subr.mxu0 0.0
    %109 = vmatpush1.msra.mxu0 %v67
    %110 = vmatprep.subr.mxu0 0.0
    %111 = vmatpush1.msra.mxu0 %v68
    %112 = vmatprep.subr.mxu0 0.0
    %113 = vmatpush1.msra.mxu0 %v69
    %114 = vmatprep.subr.mxu0 0.0
    %115 = vmatpush1.msra.mxu0 %v70
    %116 = vmatprep.subr.mxu0 0.0
    %117 = vmatpush1.msra.mxu0 %v71
    %118 = vmatprep.subr.mxu0 0.0
    %119 = vmatpush1.msra.mxu0 %v72
    %120 = vmatprep.subr.mxu0 0.0
    %121 = vmatpush1.msra.mxu0 %v73
    %122 = vmatprep.subr.mxu0 0.0
    %123 = vmatpush1.msra.mxu0 %v74
    %124 = vmatprep.subr.mxu0 0.0
    %125 = vmatpush1.msra.mxu0 %v75
    %126 = vmatprep.subr.mxu0 0.0
    %127 = vmatpush1.msra.mxu0 %v76
    %128 = vmatprep.subr.mxu0 0.0
    %129 = vmatpush1.msra.mxu0 %v77
    %130 = vmatprep.subr.mxu0 0.0
    %131 = vmatpush1.msra.mxu0 %v78
    %132 = vmatprep.subr.mxu0 0.0
    %133 = vmatpush1.msra.mxu0 %v79
    %134 = vmatprep.subr.mxu0 0.0
    %135 = vmatpush1.msra.mxu0 %v80
    %136 = vmatprep.subr.mxu0 0.0
    %137 = vmatpush1.msra.mxu0 %v81
    %138 = vmatprep.subr.mxu0 0.0
    %139 = vmatpush1.msra.mxu0 %v82
    %140 = vmatprep.subr.mxu0 0.0
    %141 = vmatpush1.msra.mxu0 %v83
    %142 = vmatprep.subr.mxu0 0.0
    %143 = vmatpush1.msra.mxu0 %v84
    %144 = vmatprep.subr.mxu0 0.0
    %145 = vmatpush1.msra.mxu0 %v85
    %146 = vmatprep.subr.mxu0 0.0
    %147 = vmatpush1.msra.mxu0 %v86
    %148 = vmatprep.subr.mxu0 0.0
    %149 = vmatpush1.msra.mxu0 %v87
    %150 = vmatprep.subr.mxu0 0.0
    %151 = vmatpush1.msra.mxu0 %v88
    %152 = vmatprep.subr.mxu0 0.0
    %153 = vmatpush1.msra.mxu0 %v89
    %154 = vmatprep.subr.mxu0 0.0
    %155 = vmatpush1.msra.mxu0 %v90
    %156 = vmatprep.subr.mxu0 0.0
    %157 = vmatpush1.msra.mxu0 %v91
    %158 = vmatprep.subr.mxu0 0.0
    %159 = vmatpush1.msra.mxu0 %v92
    %160 = vmatprep.subr.mxu0 0.0
    %161 = vmatpush1.msra.mxu0 %v93
    %162 = vmatprep.subr.mxu0 0.0
    %163 = vmatpush1.msra.mxu0 %v94
    %164 = vmatprep.subr.mxu0 0.0
    %165 = vmatpush1.msra.mxu0 %v95
    %166 = vmatprep.subr.mxu0 0.0
    %167 = vmatpush1.msra.mxu0 %v96
    %168 = vmatprep.mubr.f32.mxu0 %v64
    %169 = vmatmul.mubr.f32.gmra.mrb[0].mxu0 %v63
    %v170 = vpop.f32.mrb[0].mxu0
    %v171 = vadd.f32 %v102, %v170
    %v172 = vpop.f32.mrb[0].mxu0
    %173 = vdwg.mxu0
    %v174 = vtanh.pop %v171
    %175 = vst [vmem:[#allocation9] sm:$0xff] %v174
    %v176 = vld [vmem:[#allocation7] sm:$0xff]
    %v177 = vld [vmem:[#allocation7 + $0x8] sm:$0xff]
    %v178 = vld [vmem:[#allocation7 + $0x10] sm:$0xff]
    %v179 = vld [vmem:[#allocation7 + $0x18] sm:$0xff]
    %v180 = vld [vmem:[#allocation7 + $0x20] sm:$0xff]
    %v181 = vld [vmem:[#allocation7 + $0x28] sm:$0xff]
    %v182 = vld [vmem:[#allocation7 + $0x30] sm:$0xff]
    %v183 = vld [vmem:[#allocation7 + $0x38] sm:$0xff]
    %v184 = vld [vmem:[#allocation7 + $0x40] sm:$0xff]
    %v185 = vld [vmem:[#allocation7 + $0x48] sm:$0xff]
    %v186 = vld [vmem:[#allocation7 + $0x50] sm:$0xff]
    %v187 = vld [vmem:[#allocation7 + $0x58] sm:$0xff]
    %v188 = vld [vmem:[#allocation7 + $0x60] sm:$0xff]
    %v189 = vld [vmem:[#allocation7 + $0x68] sm:$0xff]
    %v190 = vld [vmem:[#allocation7 + $0x70] sm:$0xff]
    %v191 = vld [vmem:[#allocation7 + $0x78] sm:$0xff]
    %v192 = vld [vmem:[%s4] sm:$0x1]
    %v194 = vlaneseq
    %v195 = vshrl.u32 %v194, 7
    %v196 = vsub.s32 0, %v195
    %v197 = vrot.slane %v192, %v196
    %199 = vmatprep.subr.mxu0 0.0
    %200 = vmatpush1.msra.mxu0 %v176
    %201 = vmatprep.subr.mxu0 0.0
    %202 = vmatpush1.msra.mxu0 %v177
    %203 = vmatprep.subr.mxu0 0.0
    %204 = vmatpush1.msra.mxu0 %v178
    %205 = vmatprep.subr.mxu0 0.0
    %206 = vmatpush1.msra.mxu0 %v179
    %207 = vmatprep.subr.mxu0 0.0
    %208 = vmatpush1.msra.mxu0 %v180
    %209 = vmatprep.subr.mxu0 0.0
    %210 = vmatpush1.msra.mxu0 %v181
    %211 = vmatprep.subr.mxu0 0.0
    %212 = vmatpush1.msra.mxu0 %v182
    %213 = vmatprep.subr.mxu0 0.0
    %214 = vmatpush1.msra.mxu0 %v183
    %215 = vmatprep.subr.mxu0 0.0
    %216 = vmatpush1.msra.mxu0 %v184
    %217 = vmatprep.subr.mxu0 0.0
    %218 = vmatpush1.msra.mxu0 %v185
    %219 = vmatprep.subr.mxu0 0.0
    %220 = vmatpush1.msra.mxu0 %v186
    %221 = vmatprep.subr.mxu0 0.0
    %222 = vmatpush1.msra.mxu0 %v187
    %223 = vmatprep.subr.mxu0 0.0
    %224 = vmatpush1.msra.mxu0 %v188
    %225 = vmatprep.subr.mxu0 0.0
    %226 = vmatpush1.msra.mxu0 %v189
    %227 = vmatprep.subr.mxu0 0.0
    %228 = vmatpush1.msra.mxu0 %v190
    %229 = vmatprep.subr.mxu0 0.0
    %230 = vmatpush1.msra.mxu0 %v191
    %231 = vmatprep.subr.mxu0 0.0
    %232 = vmatpush1.msra.mxu0 0.0
    %233 = vmatprep.subr.mxu0 0.0
    %234 = vmatpush1.msra.mxu0 0.0
    %235 = vmatprep.subr.mxu0 0.0
    %236 = vmatpush1.msra.mxu0 0.0
    %237 = vmatprep.subr.mxu0 0.0
    %238 = vmatpush1.msra.mxu0 0.0
    %239 = vmatprep.subr.mxu0 0.0
    %240 = vmatpush1.msra.mxu0 0.0
    %241 = vmatprep.subr.mxu0 0.0
    %242 = vmatpush1.msra.mxu0 0.0
    %243 = vmatprep.subr.mxu0 0.0
    %244 = vmatpush1.msra.mxu0 0.0
    %245 = vmatprep.subr.mxu0 0.0
    %246 = vmatpush1.msra.mxu0 0.0
    %247 = vmatprep.subr.mxu0 0.0
    %248 = vmatpush1.msra.mxu0 0.0
    %249 = vmatprep.subr.mxu0 0.0
    %250 = vmatpush1.msra.mxu0 0.0
    %251 = vmatprep.subr.mxu0 0.0
    %252 = vmatpush1.msra.mxu0 0.0
    %253 = vmatprep.subr.mxu0 0.0
    %254 = vmatpush1.msra.mxu0 0.0
    %255 = vmatprep.subr.mxu0 0.0
    %256 = vmatpush1.msra.mxu0 0.0
    %257 = vmatprep.subr.mxu0 0.0
    %258 = vmatpush1.msra.mxu0 0.0
    %259 = vmatprep.subr.mxu0 0.0
    %260 = vmatpush1.msra.mxu0 0.0
    %261 = vmatprep.subr.mxu0 0.0
    %262 = vmatpush1.msra.mxu0 0.0
    %263 = vmatprep.mubr.f32.mxu0 0.0
    %264 = vmatmul.mubr.f32.gmra.mrb[0].mxu0 %v174
    %v265 = vpop.f32.mrb[0].mxu0
    %v266 = vadd.f32 %v197, %v265
    %v267 = vpop.f32.mrb[0].mxu0
    %268 = vdwg.mxu0
    %269 = vst [vmem:[#allocation8] sm:$0xff] %v266
    // Predicated region
    $region34: #{tpu_custom_call.1} parent=1 // pred_check
      _
    $region35: #{tpu_custom_call.1} parent=1 // pred_check_branch
      %271 = sbr.rel (0) target = $region37
    $region36: #{tpu_custom_call.1} parent=1 // pred_region
      %s273 = ssub.s32 128, 128
      %274 = vsyncadd [#allocation4], %s273
      %s276 = sshll.u32 [#allocation8], 4
      %s277 = int_to_ptr.vmem [resolvable:$true] %s276
      %279 = dma.vmem_to_hbm [thread:$0]  %s277, 128, %s5, [#allocation4]
    $region37: #{tpu_custom_call.1} parent=1 // pred_fallthru
      _
    // Predicated region
    $region38: #{tpu_custom_call.1} parent=1 // pred_check
      _
    $region39: #{tpu_custom_call.1} parent=1 // pred_check_branch
      %281 = sbr.rel (0) target = $region41
    $region40: #{tpu_custom_call.1} parent=1 // pred_region
      %s283 = ssub.s32 128, 128
      %284 = vsyncadd [#allocation10], %s283
      %s286 = sshll.u32 [#allocation9], 4
      %s287 = int_to_ptr.vmem [resolvable:$true] %s286
      %289 = dma.vmem_to_hbm [thread:$0]  %s287, 128, %s6, [#allocation10]
    $region41: #{tpu_custom_call.1} parent=1 // pred_fallthru
      _
    // Predicated region
    $region42: #{tpu_custom_call.1} parent=1 // pred_check
      _
    $region43: #{tpu_custom_call.1} parent=1 // pred_check_branch
      %291 = sbr.rel (0) target = $region45
    $region44: #{tpu_custom_call.1} parent=1 // pred_region
      %292 = dma.done [#allocation4], 128
    $region45: #{tpu_custom_call.1} parent=1 // pred_fallthru
      _
    // Predicated region
    $region46: #{tpu_custom_call.1} parent=1 // pred_check
      _
    $region47: #{tpu_custom_call.1} parent=1 // pred_check_branch
      %294 = sbr.rel (0) target = $region49
    $region48: #{tpu_custom_call.1} parent=1 // pred_region
      %295 = dma.done [#allocation10], 128
    $region49: #{tpu_custom_call.1} parent=1 // pred_fallthru
      _
    %296 = vsyncpa [#allocation3], 1
    %297 = vsyncpa [#allocation6], 1
    %298 = vsyncpa [#allocation4], 1
    %299 = vsyncpa [#allocation10], 1

</llo_original>
